<compile_context>
chip_gen: v6e
topology: v6e:2x2x1
jax: 0.10.0
libtpu: 0.0.40
codegen_flags: <defaults>
</compile_context>

<pallas_src>
import functools

import jax
import jax.numpy as jnp
from jax.experimental import pallas as pl
from jax.experimental.pallas import tpu as pltpu


def _hyperprior_kernel(step_ref,          # scalar-prefetch (SMEM): (1,) int32
                       x_ref,             # VMEM (A*B, Z)   flattened input_x
                       g_ref,             # VMEM (B2, Z)    grad[0]
                       w_ref,             # VMEM (1, 2, Z)  fc_w row selected by index_map
                       b_ref,             # SMEM (S,)       fc_b
                       init_ref,          # SMEM (S,)       hyperprior_initialization_vars
                       out_ref,           # VMEM (1, 1)
                       *, softweight, inv_nx, inv_ng):
    idx = step_ref[0]

    # mean_x = input_x.mean(0).mean(0)  -> one sublane reduce + scale      (1, Z)
    xm = jnp.sum(x_ref[...].astype(jnp.float32), axis=0, keepdims=True) * inv_nx
    # mean_grad = grad[0].mean(0)                                          (1, Z)
    gm = jnp.sum(g_ref[...].astype(jnp.float32), axis=0, keepdims=True) * inv_ng

    # Selected fc_w row, split as [w_for_mean_x ; w_for_mean_grad]         (2, Z)
    w = w_ref[0].astype(jnp.float32)
    # fc_w[idx] . cat(mean_x, mean_grad)  == sum(w_x*xm + w_g*gm)          (1, 1)
    sel = jnp.sum(w[0:1, :] * xm + w[1:2, :] * gm, keepdims=True)

    # net[idx] = sel + fc_b[idx];  out = init[idx] + softweight * net[idx]
    out_ref[...] = init_ref[idx] + softweight * (sel + b_ref[idx])


def hyperprior_basestep(input_x, grad, step_idx, fc_w, fc_b, init_vars, softweight):
    """Pallas wrapper. Returns a shape-(1,) float32 array (like the PyTorch module)."""
    A, B, Z = input_x.shape
    G, B2, Zg = grad.shape
    S, Z2 = fc_w.shape
    assert Z2 == 2 * Z and Zg == Z
    if isinstance(step_idx, int):
        assert 0 <= step_idx < S, "step_idx out of range for fc_w / init vars"

    x2d = input_x.reshape(A * B, Z)          # flatten the two mean() axes
    g2d = grad[0]                            # (B2, Z)
    w3d = fc_w.reshape(S, 2, Z)              # row -> [w_x ; w_g]
    step = jnp.asarray([step_idx], dtype=jnp.int32)

    kernel = functools.partial(
        _hyperprior_kernel,
        softweight=float(softweight),
        inv_nx=1.0 / float(A * B),
        inv_ng=1.0 / float(B2))

    out = pl.pallas_call(
        kernel,
        out_shape=jax.ShapeDtypeStruct((1, 1), jnp.float32),
        grid_spec=pltpu.PrefetchScalarGridSpec(
            num_scalar_prefetch=1,
            grid=(1,),
            in_specs=[
                pl.BlockSpec((A * B, Z), lambda i, step: (0, 0)),
                pl.BlockSpec((B2, Zg), lambda i, step: (0, 0)),
                # Only DMA the single fc_w row the step index needs.
                pl.BlockSpec((1, 2, Z), lambda i, step: (step[0], 0, 0)),
                pl.BlockSpec(memory_space=pltpu.MemorySpace.SMEM),
                pl.BlockSpec(memory_space=pltpu.MemorySpace.SMEM),
            ],
            out_specs=pl.BlockSpec((1, 1), lambda i, step: (0, 0)),
        ),
        compiler_params=pltpu.CompilerParams(
            dimension_semantics=("arbitrary",)),
    )(step, x2d, g2d, w3d,
      fc_b.astype(jnp.float32), init_vars.astype(jnp.float32))
    return out.reshape(1)


def _reference(input_x, grad, step_idx, fc_w, fc_b, init_vars, softweight):
    mean_x = jnp.mean(jnp.mean(input_x, axis=0), axis=0)
    mean_grad = jnp.mean(grad[0], axis=0)
    net = jnp.concatenate([mean_x, mean_grad], axis=0)
    net = fc_w @ net + fc_b
    net = net[step_idx]
    return (init_vars[step_idx] + softweight * net).reshape(1)


if __name__ == "__main__":
    # Module hyper-params (synthetic, deterministic init)
    update_step = 4        # S
    update_lr = 0.01
    z_dim = 32             # Z
    softweight = 0.1       # args.hyperprior_basestep_softweight

    key = jax.random.PRNGKey(0)
    kx, kg, kw = jax.random.split(key, 3)

    # Inputs implied by forward(): input_x [A, B, Z], grad list -> array [G, B2, Z]
    input_x = jax.random.normal(kx, (2, 4, z_dim), dtype=jnp.float32)
    grad = jax.random.normal(kg, (1, 8, z_dim), dtype=jnp.float32)
    step_idx = 2

    # Parameters: fc_w kaiming_normal (fan_in = 2*z_dim), fc_b zeros,
    # hyperprior_initialization_vars = update_step scalars all equal to update_lr.
    fan_in = 2 * z_dim
    fc_w = jax.random.normal(kw, (update_step, 2 * z_dim), dtype=jnp.float32) * jnp.sqrt(2.0 / fan_in)
    fc_b = jnp.zeros((update_step,), dtype=jnp.float32)
    init_vars = jnp.full((update_step,), update_lr, dtype=jnp.float32)

    out = hyperprior_basestep(input_x, grad, step_idx, fc_w, fc_b, init_vars, softweight)
    out = jax.block_until_ready(out)

    ref = _reference(input_x, grad, step_idx, fc_w, fc_b, init_vars, softweight)
    assert out.shape == (1,)
    assert jnp.allclose(out, ref, rtol=1e-5, atol=1e-6), (out, ref)

    print("KERNEL_OK")
</pallas_src>

<mosaic_0001>
module attributes {stable_mosaic.version = 11 : i64} {
  func.func @_hyperprior_kernel(%arg0: i32, %arg1: memref<1xi32, #tpu.memory_space<smem>>, %arg2: memref<8x32xf32, #tpu.memory_space<vmem>>, %arg3: memref<8x32xf32, #tpu.memory_space<vmem>>, %arg4: memref<1x2x32xf32, #tpu.memory_space<vmem>>, %arg5: memref<4xf32, #tpu.memory_space<smem>>, %arg6: memref<4xf32, #tpu.memory_space<smem>>, %arg7: memref<1x1xf32, #tpu.memory_space<vmem>>) attributes {dimension_semantics = [#tpu.dimension_semantics<arbitrary>], iteration_bounds = array<i64: 1>, scalar_prefetch = 1 : i64, scratch_operands = 0 : i64, tpu.core_type = #tpu.core_type<tc>, window_params = [{pipeline_mode = #tpu.pipeline_mode<synchronous>, transform_indices = @transform_0, window_bounds = array<i64: 8, 32>}, {pipeline_mode = #tpu.pipeline_mode<synchronous>, transform_indices = @transform_1, window_bounds = array<i64: 8, 32>}, {transform_indices = @transform_2, window_bounds = array<i64: 1, 2, 32>}, {transform_indices = @transform_3, window_bounds = array<i64: 4>}, {transform_indices = @transform_4, window_bounds = array<i64: 4>}, {pipeline_mode = #tpu.pipeline_mode<synchronous>, transform_indices = @transform_5, window_bounds = array<i64: 1, 1>}]} {
    %c0 = arith.constant 0 : index
    %0 = memref.load %arg1[%c0] : memref<1xi32, #tpu.memory_space<smem>>
    %c0_0 = arith.constant 0 : index
    %c0_1 = arith.constant 0 : index
    %1 = vector.load %arg2[%c0_0, %c0_1] : memref<8x32xf32, #tpu.memory_space<vmem>>, vector<8x32xf32>
    %cst = arith.constant dense<0.000000e+00> : vector<32xf32>
    %2 = vector.multi_reduction <add>, %1, %cst [0] : vector<8x32xf32> to vector<32xf32>
    %3 = vector.shape_cast %2 : vector<32xf32> to vector<1x32xf32>
    %cst_2 = arith.constant 1.250000e-01 : f32
    %4 = vector.broadcast %cst_2 : f32 to vector<1x32xf32>
    %5 = arith.mulf %3, %4 : vector<1x32xf32>
    %c0_3 = arith.constant 0 : index
    %c0_4 = arith.constant 0 : index
    %6 = vector.load %arg3[%c0_3, %c0_4] : memref<8x32xf32, #tpu.memory_space<vmem>>, vector<8x32xf32>
    %cst_5 = arith.constant dense<0.000000e+00> : vector<32xf32>
    %7 = vector.multi_reduction <add>, %6, %cst_5 [0] : vector<8x32xf32> to vector<32xf32>
    %8 = vector.shape_cast %7 : vector<32xf32> to vector<1x32xf32>
    %cst_6 = arith.constant 1.250000e-01 : f32
    %9 = vector.broadcast %cst_6 : f32 to vector<1x32xf32>
    %10 = arith.mulf %8, %9 : vector<1x32xf32>
    %c0_7 = arith.constant 0 : index
    %c0_8 = arith.constant 0 : index
    %c0_9 = arith.constant 0 : index
    %11 = vector.load %arg4[%c0_7, %c0_8, %c0_9] : memref<1x2x32xf32, #tpu.memory_space<vmem>>, vector<1x2x32xf32>
    %12 = vector.shape_cast %11 : vector<1x2x32xf32> to vector<2x32xf32>
    %13 = vector.extract_strided_slice %12 {offsets = [0, 0], sizes = [1, 32], strides = [1, 1]} : vector<2x32xf32> to vector<1x32xf32>
    %14 = arith.mulf %13, %5 : vector<1x32xf32>
    %15 = vector.extract_strided_slice %12 {offsets = [1, 0], sizes = [1, 32], strides = [1, 1]} : vector<2x32xf32> to vector<1x32xf32>
    %16 = arith.mulf %15, %10 : vector<1x32xf32>
    %17 = arith.addf %14, %16 : vector<1x32xf32>
    %18 = vector.shape_cast %17 : vector<1x32xf32> to vector<1x1x32xf32>
    %cst_10 = arith.constant dense<0.000000e+00> : vector<1xf32>
    %19 = vector.multi_reduction <add>, %18, %cst_10 [1, 2] : vector<1x1x32xf32> to vector<1xf32>
    %20 = vector.shape_cast %19 : vector<1xf32> to vector<1x1x1xf32>
    %21 = vector.extract %20[0, 0, 0] : f32 from vector<1x1x1xf32>
    %22 = vector.broadcast %21 : f32 to vector<1x1xf32>
    %23 = arith.index_cast %0 : i32 to index
    %24 = memref.load %arg6[%23] : memref<4xf32, #tpu.memory_space<smem>>
    %25 = arith.index_cast %0 : i32 to index
    %26 = memref.load %arg5[%25] : memref<4xf32, #tpu.memory_space<smem>>
    %27 = vector.broadcast %26 : f32 to vector<1x1xf32>
    %28 = arith.addf %22, %27 : vector<1x1xf32>
    %cst_11 = arith.constant 1.000000e-01 : f32
    %29 = vector.broadcast %cst_11 : f32 to vector<1x1xf32>
    %30 = arith.mulf %29, %28 : vector<1x1xf32>
    %31 = vector.broadcast %24 : f32 to vector<1x1xf32>
    %32 = arith.addf %31, %30 : vector<1x1xf32>
    %c0_12 = arith.constant 0 : index
    %c0_13 = arith.constant 0 : index
    %33 = vector.load %arg7[%c0_12, %c0_13] : memref<1x1xf32, #tpu.memory_space<vmem>>, vector<1x1xf32>
    tpu.vector_store %arg7[%c0_12, %c0_13], %32 {strides = array<i32>} : memref<1x1xf32, #tpu.memory_space<vmem>>, vector<1x1xf32>,
    return
  }
  func.func @transform_0(%arg0: i32, %arg1: memref<1xi32, #tpu.memory_space<smem>>) -> (i32, i32) {
    %c0_i32 = arith.constant 0 : i32
    %c0_i32_0 = arith.constant 0 : i32
    %c0_i32_1 = arith.constant 0 : i32
    return %c0_i32, %c0_i32_0 : i32, i32
  }
  func.func @transform_1(%arg0: i32, %arg1: memref<1xi32, #tpu.memory_space<smem>>) -> (i32, i32) {
    %c0_i32 = arith.constant 0 : i32
    %c0_i32_0 = arith.constant 0 : i32
    %c0_i32_1 = arith.constant 0 : i32
    return %c0_i32, %c0_i32_0 : i32, i32
  }
  func.func @transform_2(%arg0: i32, %arg1: memref<1xi32, #tpu.memory_space<smem>>) -> (i32, i32, i32) {
    %c0 = arith.constant 0 : index
    %0 = memref.load %arg1[%c0] : memref<1xi32, #tpu.memory_space<smem>>
    %c0_i32 = arith.constant 0 : i32
    %c0_i32_0 = arith.constant 0 : i32
    %c0_i32_1 = arith.constant 0 : i32
    return %0, %c0_i32, %c0_i32_0 : i32, i32, i32
  }
  func.func @transform_3(%arg0: i32, %arg1: memref<1xi32, #tpu.memory_space<smem>>) -> i32 {
    %c0_i32 = arith.constant 0 : i32
    %c0_i32_0 = arith.constant 0 : i32
    return %c0_i32 : i32
  }
  func.func @transform_4(%arg0: i32, %arg1: memref<1xi32, #tpu.memory_space<smem>>) -> i32 {
    %c0_i32 = arith.constant 0 : i32
    %c0_i32_0 = arith.constant 0 : i32
    return %c0_i32 : i32
  }
  func.func @transform_5(%arg0: i32, %arg1: memref<1xi32, #tpu.memory_space<smem>>) -> (i32, i32) {
    %c0_i32 = arith.constant 0 : i32
    %c0_i32_0 = arith.constant 0 : i32
    %c0_i32_1 = arith.constant 0 : i32
    return %c0_i32, %c0_i32_0 : i32, i32
  }
}

</mosaic_0001>

<llo_original>
// kernel: tpu_custom_call.1
$region0: #{tpu_custom_call.1}
  #allocation0 [shape = 'u32[]', space=smem, size = 0x4, offset = 0x4, fixed_abs, tag = 'smem constant byte address 0x4 - core index']
  #allocation1 [shape = 'u32[144,128]{1,0:T(1,128)}', space=vmem, size = 0x12000, scoped, tag = 'internal scratch']
  #allocation2 [shape = 's32[1]{0}', space=sflag, size = 0x4, scoped, tag = 'scoped memory for tpu_custom_call.1']
  #allocation3 [shape = 's32[1]{0:T(128)S(6)}', space=smem, size = 0x200, scoped, tag = 'prefetched SMEM operand 0']
  %s0 = inlined_call_operand.<no memory space> [shape: s32[1], index: 0, kind: input, shape index: {}]
  %s1 = inlined_call_operand.hbm [shape: f32[8,32], index: 1, kind: input, shape index: {}]
  %s2 = inlined_call_operand.hbm [shape: f32[8,32], index: 2, kind: input, shape index: {}]
  %s3 = inlined_call_operand.hbm [shape: f32[4,2,32], index: 3, kind: input, shape index: {}]
  %s4 = inlined_call_operand.vmem [shape: f32[4], index: 4, kind: input, shape index: {}]
  %s5 = inlined_call_operand.vmem [shape: f32[4], index: 5, kind: input, shape index: {}]
  %s6 = inlined_call_operand.hbm [shape: f32[1,1], index: 6, kind: output, shape index: {}]
  %s7 = sld [smem:[#allocation0]]
  $region50: #{tpu_custom_call.1} parent=0
    _
  %s9 = ssub.s32 1, %s7
  %s10 = scalar_select 0, %s9, %s7
  %11 = sst [smem:[#allocation3]] %s0
  $region1: #{tpu_custom_call.1} parent=0
    #allocation4 [shape = 'u8[4096]{0}', space=vmem, size = 0x1000, scoped, tag = 'input window, operand 1, single buffered']
    #allocation5 [shape = 's32[1]{0}', space=sflag, size = 0x4, scoped, tag = 'scoped memory for tpu_custom_call.1']
    #allocation6 [shape = 's32[1]{0}', space=sflag, size = 0x4, scoped, tag = 'scoped memory for tpu_custom_call.1']
    #allocation7 [shape = 's32[1]{0}', space=sflag, size = 0x4, scoped, tag = 'scoped memory for tpu_custom_call.1']
    #allocation8 [shape = 'u8[4096]{0}', space=vmem, size = 0x1000, scoped, tag = 'input window, operand 2, single buffered']
    #allocation9 [shape = 's32[1]{0}', space=sflag, size = 0x4, scoped, tag = 'scoped memory for tpu_custom_call.1']
    #allocation10 [shape = 'u8[1024]{0}', space=vmem, size = 0x400, scoped, tag = 'input window, operand 3, single buffered']
    #allocation11 [shape = 'u8[512]{0}', space=smem, size = 0x200, scoped, tag = 'input window, operand 4, single buffered']
    #allocation12 [shape = 'u8[512]{0}', space=smem, size = 0x200, scoped, tag = 'input window, operand 5, single buffered']
    #allocation13 [shape = 's32[1]{0}', space=sflag, size = 0x4, scoped, tag = 'scoped memory for tpu_custom_call.1']
    #allocation14 [shape = 'u8[512]{0}', space=vmem, size = 0x400, scoped, tag = 'output window, operand 0, single buffered']
    %12 = vsyncpa [#allocation5], 0
    %13 = vsyncpa [#allocation9], 0
    %14 = vsyncpa [#allocation7], 0
    %15 = vsyncpa [#allocation13], 0
    %16 = vsyncpa [#allocation6], 0
    // Predicated region
    $region2: #{tpu_custom_call.1} parent=1 // pred_check
      _
    $region3: #{tpu_custom_call.1} parent=1 // pred_check_branch
      %18 = sbr.rel (0) target = $region5
    $region4: #{tpu_custom_call.1} parent=1 // pred_region
      %s20 = ssub.s32 128, 128
      %21 = vsyncadd [#allocation5], %s20
      %s23 = sshll.u32 [#allocation4], 4
      %s24 = int_to_ptr.vmem [resolvable:$true] %s23
      %26 = dma.hbm_to_vmem [thread:$0]  %s1, 128, %s24, [#allocation5]
    $region5: #{tpu_custom_call.1} parent=1 // pred_fallthru
      _
    // Predicated region
    $region6: #{tpu_custom_call.1} parent=1 // pred_check
      _
    $region7: #{tpu_custom_call.1} parent=1 // pred_check_branch
      %28 = sbr.rel (0) target = $region9
    $region8: #{tpu_custom_call.1} parent=1 // pred_region
      %s30 = ssub.s32 128, 128
      %31 = vsyncadd [#allocation9], %s30
      %s33 = sshll.u32 [#allocation8], 4
      %s34 = int_to_ptr.vmem [resolvable:$true] %s33
      %36 = dma.hbm_to_vmem [thread:$0]  %s2, 128, %s34, [#allocation9]
    $region9: #{tpu_custom_call.1} parent=1 // pred_fallthru
      _
    // Predicated region
    $region10: #{tpu_custom_call.1} parent=1 // pred_check
      _
    $region11: #{tpu_custom_call.1} parent=1 // pred_check_branch
      %38 = sbr.rel (0) target = $region13
    $region12: #{tpu_custom_call.1} parent=1 // pred_region
      %s39 = sld [smem:[#allocation3]]
      %s41 = ssub.s32 32, 32
      %42 = vsyncadd [#allocation9], %s41
      %s43 = smul.addr %s39, 32
      %s44 = scalar_lea.hbm %s3, %s43
      %s46 = sshll.u32 [#allocation10], 4
      %s47 = int_to_ptr.vmem [resolvable:$true] %s46
      %49 = dma.hbm_to_vmem [thread:$0]  %s44, 32, %s47, [#allocation9]
    $region13: #{tpu_custom_call.1} parent=1 // pred_fallthru
      _
    // Predicated region
    $region14: #{tpu_custom_call.1} parent=1 // pred_check
      _
    $region15: #{tpu_custom_call.1} parent=1 // pred_check_branch
      %51 = sbr.rel (0) target = $region17
    $region16: #{tpu_custom_call.1} parent=1 // pred_region
      %s53 = ssub.s32 16, 16
      %54 = vsyncadd [#allocation7], %s53
      %s56 = sshll.u32 %s4, 4
      %s57 = int_to_ptr.vmem [resolvable:$true] %s56
      %59 = dma.vmem_to_smem %s57, 16, [#allocation11], [#allocation7]
    $region17: #{tpu_custom_call.1} parent=1 // pred_fallthru
      _
    // Predicated region
    $region18: #{tpu_custom_call.1} parent=1 // pred_check
      _
    $region19: #{tpu_custom_call.1} parent=1 // pred_check_branch
      %61 = sbr.rel (0) target = $region21
    $region20: #{tpu_custom_call.1} parent=1 // pred_region
      %s63 = ssub.s32 16, 16
      %64 = vsyncadd [#allocation13], %s63
      %s66 = sshll.u32 %s5, 4
      %s67 = int_to_ptr.vmem [resolvable:$true] %s66
      %69 = dma.vmem_to_smem %s67, 16, [#allocation12], [#allocation13]
    $region21: #{tpu_custom_call.1} parent=1 // pred_fallthru
      _
    // Predicated region
    $region22: #{tpu_custom_call.1} parent=1 // pred_check
      _
    $region23: #{tpu_custom_call.1} parent=1 // pred_check_branch
      %71 = sbr.rel (0) target = $region25
    $region24: #{tpu_custom_call.1} parent=1 // pred_region
      %72 = dma.done [#allocation5], 128
    $region25: #{tpu_custom_call.1} parent=1 // pred_fallthru
      _
    // Predicated region
    $region26: #{tpu_custom_call.1} parent=1 // pred_check
      _
    $region27: #{tpu_custom_call.1} parent=1 // pred_check_branch
      %74 = sbr.rel (0) target = $region29
    $region28: #{tpu_custom_call.1} parent=1 // pred_region
      %75 = dma.done [#allocation9], 128
    $region29: #{tpu_custom_call.1} parent=1 // pred_fallthru
      _
    // Predicated region
    $region30: #{tpu_custom_call.1} parent=1 // pred_check
      _
    $region31: #{tpu_custom_call.1} parent=1 // pred_check_branch
      %77 = sbr.rel (0) target = $region33
    $region32: #{tpu_custom_call.1} parent=1 // pred_region
      %78 = dma.done [#allocation9], 32
    $region33: #{tpu_custom_call.1} parent=1 // pred_fallthru
      _
    // Predicated region
    $region34: #{tpu_custom_call.1} parent=1 // pred_check
      _
    $region35: #{tpu_custom_call.1} parent=1 // pred_check_branch
      %80 = sbr.rel (0) target = $region37
    $region36: #{tpu_custom_call.1} parent=1 // pred_region
      %81 = dma.done [#allocation7], 16
    $region37: #{tpu_custom_call.1} parent=1 // pred_fallthru
      _
    // Predicated region
    $region38: #{tpu_custom_call.1} parent=1 // pred_check
      _
    $region39: #{tpu_custom_call.1} parent=1 // pred_check_branch
      %83 = sbr.rel (0) target = $region41
    $region40: #{tpu_custom_call.1} parent=1 // pred_region
      %84 = dma.done [#allocation13], 16
    $region41: #{tpu_custom_call.1} parent=1 // pred_fallthru
      _
    %85 = sfence
    %s86 = sld [smem:[#allocation3]]
    %s87 = sld [smem:[#allocation3]]
    %v88 = vld [vmem:[#allocation4] sm:$0xff]
    %vm89 = vcmask 261120
    %v90 = vsel %vm89, %v88, 0.0
    %v91 = vrot.slane %v90, 4
    %v92 = vadd.f32 %v90, %v91
    %v93 = vrot.slane %v92, 2
    %v94 = vadd.f32 %v92, %v93
    %v95 = vrot.slane %v94, 1
    %v96 = vadd.f32 %v94, %v95
    %v97 = vmul.f32 %v96, 0.125
    %v98 = vld [vmem:[#allocation8] sm:$0xff]
    %v99 = vsel %vm89, %v98, 0.0
    %v100 = vrot.slane %v99, 4
    %v101 = vadd.f32 %v99, %v100
    %v102 = vrot.slane %v101, 2
    %v103 = vadd.f32 %v101, %v102
    %v104 = vrot.slane %v103, 1
    %v105 = vadd.f32 %v103, %v104
    %v106 = vmul.f32 %v105, 0.125
    %v107 = vld [vmem:[#allocation10] sm:$0x3]
    %v108 = vmul.f32 %v107, %v97
    %v109 = vmul.f32 %v107, %v106
    %v111 = vrot.slane %v109, 1
    %v113 = vadd.f32 %v108, %v111
    %vm114 = vcmask 253952
    %v115 = vsel %vm114, %v113, 0.0
    %116 = vadd.xlane.f32.xlu0 %v115
    %v117 = vpop.xlane.xlu0 %116
    %v118 = vrot.slane %v117, 4
    %v119 = vadd.f32 %v117, %v118
    %v120 = vrot.slane %v119, 2
    %v121 = vadd.f32 %v119, %v120
    %v122 = vrot.slane %v121, 1
    %v123 = vadd.f32 %v121, %v122
    %s124 = vtos %v123
    %v125 = vstv %s124
    %s126 = sld [smem:[#allocation12 + %s87]]
    %s127 = sld [smem:[#allocation11 + %s87]]
    %v128 = vstv %s127
    %v129 = vadd.f32 %v125, %v128
    %v130 = vmul.f32 %v129, 0.1
    %v131 = vstv %s126
    %v132 = vadd.f32 %v131, %v130
    %vm133 = vcmask 0
    %134 = vst.msk [vmem:[#allocation14] sm:$0x1] %vm133, %v132
    // Predicated region
    $region42: #{tpu_custom_call.1} parent=1 // pred_check
      _
    $region43: #{tpu_custom_call.1} parent=1 // pred_check_branch
      %136 = sbr.rel (0) target = $region45
    $region44: #{tpu_custom_call.1} parent=1 // pred_region
      %s138 = ssub.s32 16, 16
      %139 = vsyncadd [#allocation6], %s138
      %s141 = sshll.u32 [#allocation14], 4
      %s142 = int_to_ptr.vmem [resolvable:$true] %s141
      %144 = dma.vmem_to_hbm [thread:$0]  %s142, 16, %s6, [#allocation6]
    $region45: #{tpu_custom_call.1} parent=1 // pred_fallthru
      _
    // Predicated region
    $region46: #{tpu_custom_call.1} parent=1 // pred_check
      _
    $region47: #{tpu_custom_call.1} parent=1 // pred_check_branch
      %146 = sbr.rel (0) target = $region49
    $region48: #{tpu_custom_call.1} parent=1 // pred_region
      %147 = dma.done [#allocation6], 16
    $region49: #{tpu_custom_call.1} parent=1 // pred_fallthru
      _
    %148 = vsyncpa [#allocation5], 1
    %149 = vsyncpa [#allocation9], 1
    %150 = vsyncpa [#allocation6], 1
    %151 = vsyncpa [#allocation7], 1
    %152 = vsyncpa [#allocation13], 1

</llo_original>
